<compile_context>
chip_gen: v5e
topology: v5e:2x2
jax: 0.10.0
libtpu: 0.0.40
codegen_flags: <defaults>
</compile_context>

<pallas_src>
import functools

import jax
import jax.numpy as jnp
from jax.experimental import pallas as pl
from jax.experimental.pallas import tpu as pltpu


# ---------------------------------------------------------------------------
# Pass 1: per-edge-type FiLM messages   msg[e] = relu(gamma * (X@W[e]) + beta)
# ---------------------------------------------------------------------------
def film_msg_kernel(x_ref, wcat_ref, msg_ref, *, out_size):
    # grid = (E, node_tiles); every grid point writes a distinct output block.
    x = x_ref[...]                                                   # [tn, in] bf16
    fused = jnp.dot(x, wcat_ref[...],
                    preferred_element_type=jnp.float32)              # [tn, 3*out] f32
    # out_size is a multiple of 128 -> these are lane-aligned slices.
    m = fused[:, :out_size]
    gamma = fused[:, out_size:2 * out_size]
    beta = fused[:, 2 * out_size:]
    msg_ref[...] = jnp.maximum(gamma * m + beta, 0.0).astype(msg_ref.dtype)


# ---------------------------------------------------------------------------
# Pass 2: graph aggregation  h = sum_e A[e] @ msg[e]  followed by LayerNorm
# ---------------------------------------------------------------------------
def aggregate_ln_kernel(a_ref, msg_ref, lng_ref, lnb_ref, o_ref, acc_ref,
                        *, ln_eps):
    # grid = (dst_tiles, E, src_chunks); (E, src) reduction is innermost.
    e = pl.program_id(1)
    c = pl.program_id(2)

    @pl.when(jnp.logical_and(e == 0, c == 0))
    def _():
        acc_ref[...] = jnp.zeros_like(acc_ref)

    # acc[dst_tile] += A[e, dst_tile, src_chunk] @ msg[e, src_chunk]
    # bf16 x bf16 on the MXU, f32 accumulator.
    acc_ref[...] += jnp.dot(a_ref[...], msg_ref[...],
                            preferred_element_type=jnp.float32)

    @pl.when(jnp.logical_and(e == pl.num_programs(1) - 1,
                             c == pl.num_programs(2) - 1))
    def _():
        h = acc_ref[...]
        mean = jnp.mean(h, axis=-1, keepdims=True)
        cen = h - mean
        var = jnp.mean(cen * cen, axis=-1, keepdims=True)
        y = cen * jax.lax.rsqrt(var + ln_eps) * lng_ref[...] + lnb_ref[...]
        # TODO(synk): nn.Dropout(0.1) omitted (eval-mode identity; PyTorch RNG
        # not reproducible).
        o_ref[...] = y.astype(o_ref.dtype)


# ---------------------------------------------------------------------------
# Wrapper
# ---------------------------------------------------------------------------
def _vmem_limit_bytes():
    """~96 MiB on 128-MiB-VMEM chips (v5e/v6e), ~48 MiB on v7x (64 MiB)."""
    try:
        cap = pltpu.get_tpu_info().vmem_capacity_bytes
    except Exception:  # not queryable -> conservative default
        cap = 64 * 1024 * 1024
    return min(int(cap * 3 // 4), 112 * 1024 * 1024)


def gnn_film_forward(x, Wcat, A, ln_w, ln_b, *, ln_eps=1e-5,
                     tile_m=256, tile_src=512, tile_n=256):
    """GNN-FiLM layer forward.

    x    : [N, in]           node features (any float dtype; cast to bf16)
    Wcat : [E, in, 3*out]    fused per-edge-type weights [W | F_gamma | F_beta]
    A    : [E, N, N]         dense 0/1 adjacency (dst, src), ALREADY bf16
                             (narrow A upstream; it dominates HBM traffic)
    ln_w, ln_b : [out]       LayerNorm affine parameters
    """
    N, in_size = x.shape
    E = Wcat.shape[0]
    out_size = Wcat.shape[-1] // 3
    assert A.shape == (E, N, N)
    assert out_size % 128 == 0, "out_size must be a multiple of 128 (lane dim)"

    tm = min(tile_m, N)
    tc = min(tile_src, N)
    tn = min(tile_n, N)
    assert N % tm == 0 and N % tc == 0 and N % tn == 0, \
        "N must be divisible by the chosen tile sizes"
    assert tm % 8 == 0 and tc % 128 == 0 and tn % 8 == 0, \
        "tile sizes must respect (sublane, lane) tiling"

    num_dst_tiles = N // tm
    num_src_chunks = N // tc
    num_node_tiles = N // tn
    vmem_limit = _vmem_limit_bytes()

    x_bf16 = x.astype(jnp.bfloat16)
    wcat_bf16 = Wcat.astype(jnp.bfloat16)
    a_bf16 = A if A.dtype == jnp.bfloat16 else A.astype(jnp.bfloat16)

    # ---------------- pass 1: msg[E, N, out] (bf16) ----------------
    msg_cost = pl.CostEstimate(
        flops=int(2 * E * N * in_size * 3 * out_size),
        transcendentals=0,
        bytes_accessed=int(E * N * in_size * 2 + E * in_size * 3 * out_size * 2
                           + E * N * out_size * 2),
    )
    msg = pl.pallas_call(
        functools.partial(film_msg_kernel, out_size=out_size),
        out_shape=jax.ShapeDtypeStruct((E, N, out_size), jnp.bfloat16),
        grid_spec=pltpu.PrefetchScalarGridSpec(
            num_scalar_prefetch=0,
            grid=(E, num_node_tiles),
            in_specs=[
                pl.BlockSpec((tn, in_size), lambda e, n: (n, 0)),
                pl.BlockSpec((pl.Squeezed(), in_size, 3 * out_size),
                             lambda e, n: (e, 0, 0)),
            ],
            out_specs=pl.BlockSpec((pl.Squeezed(), tn, out_size),
                                   lambda e, n: (e, n, 0)),
        ),
        compiler_params=pltpu.CompilerParams(
            dimension_semantics=("parallel", "parallel"),
            vmem_limit_bytes=vmem_limit,
        ),
        cost_estimate=msg_cost,
    )(x_bf16, wcat_bf16)

    # ---------------- pass 2: aggregation + LayerNorm ----------------
    agg_cost = pl.CostEstimate(
        flops=int(2 * E * N * N * out_size),
        transcendentals=int(N),  # rsqrt per destination row
        bytes_accessed=int(E * N * N * 2                              # A (bf16)
                           + num_dst_tiles * E * N * out_size * 2     # msg refetch
                           + N * out_size * 4),                       # output
    )
    out = pl.pallas_call(
        functools.partial(aggregate_ln_kernel, ln_eps=ln_eps),
        out_shape=jax.ShapeDtypeStruct((N, out_size), x.dtype),
        grid_spec=pltpu.PrefetchScalarGridSpec(
            num_scalar_prefetch=0,
            grid=(num_dst_tiles, E, num_src_chunks),   # reductions innermost
            in_specs=[
                # adjacency tile for (edge type e, dst tile d, src chunk c)
                pl.BlockSpec((pl.Squeezed(), tm, tc),
                             lambda d, e, c: (e, d, c)),
                # precomputed messages for (edge type e, src chunk c)
                pl.BlockSpec((pl.Squeezed(), tc, out_size),
                             lambda d, e, c: (e, c, 0)),
                # LayerNorm affine params (resident)
                pl.BlockSpec((1, out_size), lambda d, e, c: (0, 0)),
                pl.BlockSpec((1, out_size), lambda d, e, c: (0, 0)),
            ],
            out_specs=pl.BlockSpec((tm, out_size), lambda d, e, c: (d, 0)),
            scratch_shapes=[pltpu.VMEM((tm, out_size), jnp.float32)],
        ),
        compiler_params=pltpu.CompilerParams(
            # dst tiles independent -> parallel (megacore on v7x);
            # (edge type, src chunk) reductions -> arbitrary.
            dimension_semantics=("parallel", "arbitrary", "arbitrary"),
            vmem_limit_bytes=vmem_limit,
        ),
        cost_estimate=agg_cost,
    )(a_bf16, msg,
      ln_w.reshape(1, out_size).astype(jnp.float32),
      ln_b.reshape(1, out_size).astype(jnp.float32))

    return out


# ---------------------------------------------------------------------------
# Pure-JAX reference (f32, highest precision)
# ---------------------------------------------------------------------------
def gnn_film_reference(x, W, F_gamma, F_beta, A, ln_w, ln_b, eps=1e-5):
    hi = jax.lax.Precision.HIGHEST
    N = x.shape[0]
    out_size = W.shape[-1]
    h = jnp.zeros((N, out_size), jnp.float32)
    for e in range(W.shape[0]):
        msg = jnp.dot(x, W[e], precision=hi)
        gamma = jnp.dot(x, F_gamma[e], precision=hi)
        beta = jnp.dot(x, F_beta[e], precision=hi)
        msg = jnp.maximum(gamma * msg + beta, 0.0)
        h = h + jnp.dot(A[e], msg, precision=hi)
    mean = h.mean(-1, keepdims=True)
    var = ((h - mean) ** 2).mean(-1, keepdims=True)
    return (h - mean) / jnp.sqrt(var + eps) * ln_w + ln_b


if __name__ == "__main__":
    # Small synthetic heterograph: one node type, E edge types.
    # Lane-dense feature dims (multiples of 128) keep stores unmasked.
    N, in_size, out_size, E = 256, 128, 128, 3

    key = jax.random.PRNGKey(0)
    kx, kw, kf, ka = jax.random.split(key, 4)

    x = jax.random.normal(kx, (N, in_size), jnp.float32)

    # nn.Linear(in, out, bias=False) weights, stored transposed as [in, out].
    bound_w = 1.0 / jnp.sqrt(in_size)
    W = jax.random.uniform(kw, (E, in_size, out_size), jnp.float32,
                           -bound_w, bound_w)
    # nn.Linear(in, 2*out, bias=False): split into gamma / beta halves.
    film = jax.random.uniform(kf, (E, in_size, 2 * out_size), jnp.float32,
                              -bound_w, bound_w)
    F_gamma = film[:, :, :out_size]
    F_beta = film[:, :, out_size:]

    # Dense 0/1 adjacency per edge type, [dst, src].  Stored bf16 upstream
    # (0/1 exact) so the kernel never re-materializes a narrowed copy in HBM.
    A = (jax.random.uniform(ka, (E, N, N)) < 0.1).astype(jnp.bfloat16)

    # LayerNorm defaults: weight=1, bias=0.
    ln_w = jnp.ones((out_size,), jnp.float32)
    ln_b = jnp.zeros((out_size,), jnp.float32)

    # Fused weight layout for the kernel: [W | F_gamma | F_beta].
    Wcat = jnp.concatenate([W, F_gamma, F_beta], axis=-1)   # [E, in, 3*out]

    out = gnn_film_forward(x, Wcat, A, ln_w, ln_b)
    out = jax.block_until_ready(out)

    ref = gnn_film_reference(x, W, F_gamma, F_beta, A.astype(jnp.float32),
                             ln_w, ln_b)
    assert out.shape == (N, out_size)
    # bf16 matmul operands -> tolerance loosened vs pure-f32.
    max_err = float(jnp.max(jnp.abs(out - ref)))
    assert jnp.allclose(out, ref, atol=2e-2, rtol=2e-2), \
        f"mismatch vs reference (max abs err {max_err})"

    print("KERNEL_OK")
</pallas_src>

<mosaic_0001>
module attributes {stable_mosaic.version = 11 : i64} {
  func.func @film_msg_kernel(%arg0: i32, %arg1: i32, %arg2: memref<256x128xbf16, #tpu.memory_space<vmem>>, %arg3: memref<1x128x384xbf16, #tpu.memory_space<vmem>>, %arg4: memref<1x256x128xbf16, #tpu.memory_space<vmem>>) attributes {dimension_semantics = [#tpu.dimension_semantics<parallel>, #tpu.dimension_semantics<parallel>], iteration_bounds = array<i64: 3, 1>, scalar_prefetch = 0 : i64, scratch_operands = 0 : i64, tpu.core_type = #tpu.core_type<tc>, window_params = [{transform_indices = @transform_0, window_bounds = array<i64: 256, 128>}, {transform_indices = @transform_1, window_bounds = array<i64: 1, 128, 384>}, {transform_indices = @transform_2, window_bounds = array<i64: 1, 256, 128>}]} {
    %c0 = arith.constant 0 : index
    %c0_0 = arith.constant 0 : index
    %0 = vector.load %arg2[%c0, %c0_0] : memref<256x128xbf16, #tpu.memory_space<vmem>>, vector<256x128xbf16>
    %c0_1 = arith.constant 0 : index
    %c0_2 = arith.constant 0 : index
    %c0_3 = arith.constant 0 : index
    %1 = vector.load %arg3[%c0_1, %c0_2, %c0_3] : memref<1x128x384xbf16, #tpu.memory_space<vmem>>, vector<1x128x384xbf16>
    %2 = vector.shape_cast %1 : vector<1x128x384xbf16> to vector<128x384xbf16>
    %cst = arith.constant dense<0.000000e+00> : vector<256x384xf32>
    %3 = tpu.matmul %0, %2, %cst {dimension_numbers = #tpu.dot_dimension_numbers<[1], [0], [0], [1], [0, 0, 1, 1], [], []>} : vector<256x128xbf16>, vector<128x384xbf16>, vector<256x384xf32> -> vector<256x384xf32>
    %4 = vector.extract_strided_slice %3 {offsets = [0, 0], sizes = [256, 128], strides = [1, 1]} : vector<256x384xf32> to vector<256x128xf32>
    %5 = vector.extract_strided_slice %3 {offsets = [0, 128], sizes = [256, 128], strides = [1, 1]} : vector<256x384xf32> to vector<256x128xf32>
    %6 = vector.extract_strided_slice %3 {offsets = [0, 256], sizes = [256, 128], strides = [1, 1]} : vector<256x384xf32> to vector<256x128xf32>
    %7 = arith.mulf %5, %4 : vector<256x128xf32>
    %8 = arith.addf %7, %6 : vector<256x128xf32>
    %cst_4 = arith.constant 0.000000e+00 : f32
    %9 = vector.broadcast %cst_4 : f32 to vector<256x128xf32>
    %10 = arith.maximumf %8, %9 : vector<256x128xf32>
    %11 = arith.truncf %10 : vector<256x128xf32> to vector<256x128xbf16>
    %c0_5 = arith.constant 0 : index
    %c0_6 = arith.constant 0 : index
    %c0_7 = arith.constant 0 : index
    %12 = vector.load %arg4[%c0_5, %c0_6, %c0_7] : memref<1x256x128xbf16, #tpu.memory_space<vmem>>, vector<1x256x128xbf16>
    %13 = vector.shape_cast %12 : vector<1x256x128xbf16> to vector<256x128xbf16>
    %14 = vector.shape_cast %11 : vector<256x128xbf16> to vector<1x256x128xbf16>
    tpu.vector_store %arg4[%c0_5, %c0_6, %c0_7], %14 {strides = array<i32>} : memref<1x256x128xbf16, #tpu.memory_space<vmem>>, vector<1x256x128xbf16>,
    return
  }
  func.func @transform_0(%arg0: i32, %arg1: i32) -> (i32, i32) {
    %c0_i32 = arith.constant 0 : i32
    %c0_i32_0 = arith.constant 0 : i32
    return %arg1, %c0_i32 : i32, i32
  }
  func.func @transform_1(%arg0: i32, %arg1: i32) -> (i32, i32, i32) {
    %c0_i32 = arith.constant 0 : i32
    %c0_i32_0 = arith.constant 0 : i32
    %c0_i32_1 = arith.constant 0 : i32
    return %arg0, %c0_i32, %c0_i32_0 : i32, i32, i32
  }
  func.func @transform_2(%arg0: i32, %arg1: i32) -> (i32, i32, i32) {
    %c0_i32 = arith.constant 0 : i32
    %c0_i32_0 = arith.constant 0 : i32
    return %arg0, %arg1, %c0_i32 : i32, i32, i32
  }
}

</mosaic_0001>

<llo_original>
// kernel: tpu_custom_call.1
$region0: #{tpu_custom_call.1}
  #allocation0 [shape = 'u32[]', space=smem, size = 0x4, offset = 0x4, fixed_abs, tag = 'smem constant byte address 0x4 - core index']
  #allocation1 [shape = 'u32[72,128]{1,0:T(1,128)}', space=vmem, size = 0x9000, scoped, tag = 'internal scratch']
  %s0 = inlined_call_operand.hbm [shape: bf16[256,128], index: 0, kind: input, shape index: {}]
  %s1 = inlined_call_operand.hbm [shape: bf16[3,128,384], index: 1, kind: input, shape index: {}]
  %s2 = inlined_call_operand.hbm [shape: bf16[3,256,128], index: 2, kind: output, shape index: {}]
  %s3 = sld [smem:[#allocation0]]
  $region49: #{tpu_custom_call.1} parent=0
    _
  %s5 = ssub.s32 1, %s3
  %s6 = scalar_select 0, %s5, %s3
  $region1: #{tpu_custom_call.1} parent=0
    #allocation2 [shape = 'u8[65536]{0}', space=vmem, size = 0x10000, scoped, tag = 'input window, operand 0, single buffered']
    #allocation3 [shape = 's32[2]{0}', space=sflag, size = 0x8, scoped, tag = 'scoped memory for tpu_custom_call.1']
    #allocation4 [shape = 's32[2]{0}', space=sflag, size = 0x8, scoped, tag = 'scoped memory for tpu_custom_call.1']
    #allocation5 [shape = 'u8[196608]{0}', space=vmem, size = 0x30000, scoped, tag = 'input window, operand 1']
    #allocation6 [shape = 's32[2]{0}', space=sflag, size = 0x8, scoped, tag = 'scoped memory for tpu_custom_call.1']
    #allocation7 [shape = 'u8[131072]{0}', space=vmem, size = 0x20000, scoped, tag = 'output window, operand 0']
    %7 = vsyncpa [#allocation3], 0
    %8 = vsyncpa [#allocation6], 0
    %s9 = scalar_lea.sflag [#allocation6], 1
    %10 = vsyncpa %s9, 0
    %11 = vsyncpa [#allocation4], 0
    %s12 = scalar_lea.sflag [#allocation4], 1
    %13 = vsyncpa %s12, 0
    loop: start=0, step=1, limit=5
    $region2: #{tpu_custom_call.1} parent=1 // loop_pre_header
      _
    $region3: #{tpu_custom_call.1} parent=1 // loop_header
      %s15 = sphi 0, %s19
      %p16 = scmp.ge.s32.totalorder %s15, 5
      %s22 = sphi 0, %s34
      %s23 = sphi 0, %s30
      %s24 = sphi 0, %s22
      %s25 = sphi 0, %s23
      %s26 = sphi 0, %s24
      %s27 = sphi 0, %s25
      %s37 = sphi 0, %s39
      %s40 = sphi 0, %s37
      %s41 = sphi 0, %s40
      %s57 = sphi 0, %s41
      %s63 = sphi 0, %s65
      %s66 = sphi 0, %s63
      %s67 = sphi 0, %s66
      %s83 = sphi 0, %s67
      %s91 = sphi 0, %s93
      %s94 = sphi 0, %s91
      %s95 = sphi 0, %s94
      %s111 = sphi 0, %s95
    $region4: #{tpu_custom_call.1} parent=1 // loop_header_branch
      %18 = sbr.rel (%p16) target = $region8
    $region5: #{tpu_custom_call.1} parent=1 // loop_body
      %s20 = ssub.s32 %s15, 1
      %s21 = ssub.s32 %s15, 2
      %s28 = sadd.s32 1, %s23
      %p29 = scmp.ge.s32.totalorder %s28, 1
      %s30 = scalar_select %p29, 0, %s28
      %s31 = sadd.s32 1, %s22
      %s32 = scalar_select %p29, %s31, %s22
      %p33 = scmp.ge.s32.totalorder %s32, 3
      %s34 = scalar_select %p33, 0, %s32
      %s35 = ssub.s32 %s23, %s30
      %p36 = scmp.eq.s32.totalorder %s35, 0
      %s38 = sadd.s32 %s37, 1
      %s39 = scalar_select %p36, %s37, %s38
      %p42 = pneg %p36
      %p43 = scmp.eq.s32.totalorder %s15, 2
      %p44 = por %p42, %p43
      %p45 = scmp.ne.s32.totalorder %s37, %s40
      %p46 = scmp.eq.s32.totalorder %s15, 0
      %p47 = por %p45, %p46
      %p48 = scmp.ne.s32.totalorder %s37, %s40
      %p49 = scmp.eq.s32.totalorder %s20, 2
      %p50 = por %p48, %p49
      %p51 = scmp.ne.s32.totalorder %s40, %s41
      %p52 = scmp.eq.s32.totalorder %s20, 0
      %p53 = por %p51, %p52
      %p54 = scmp.ne.s32.totalorder %s40, %s41
      %p55 = scmp.eq.s32.totalorder %s21, 2
      %p56 = por %p54, %p55
      %p58 = scmp.ne.s32.totalorder %s41, %s57
      %p59 = scmp.eq.s32.totalorder %s21, 0
      %p60 = por %p58, %p59
      %s61 = ssub.s32 %s22, %s34
      %p62 = scmp.eq.s32.totalorder %s61, 0
      %s64 = sadd.s32 %s63, 1
      %s65 = scalar_select %p62, %s63, %s64
      %p68 = pneg %p62
      %p69 = scmp.eq.s32.totalorder %s15, 2
      %p70 = por %p68, %p69
      %p71 = scmp.ne.s32.totalorder %s63, %s66
      %p72 = scmp.eq.s32.totalorder %s15, 0
      %p73 = por %p71, %p72
      %p74 = scmp.ne.s32.totalorder %s63, %s66
      %p75 = scmp.eq.s32.totalorder %s20, 2
      %p76 = por %p74, %p75
      %p77 = scmp.ne.s32.totalorder %s66, %s67
      %p78 = scmp.eq.s32.totalorder %s20, 0
      %p79 = por %p77, %p78
      %p80 = scmp.ne.s32.totalorder %s66, %s67
      %p81 = scmp.eq.s32.totalorder %s21, 2
      %p82 = por %p80, %p81
      %p84 = scmp.ne.s32.totalorder %s67, %s83
      %p85 = scmp.eq.s32.totalorder %s21, 0
      %p86 = por %p84, %p85
      %s87 = ssub.s32 %s22, %s34
      %s88 = ssub.s32 %s23, %s30
      %s89 = sor.u32 %s87, %s88
      %p90 = scmp.eq.s32.totalorder %s89, 0
      %s92 = sadd.s32 %s91, 1
      %s93 = scalar_select %p90, %s91, %s92
      %p96 = pneg %p90
      %p97 = scmp.eq.s32.totalorder %s15, 2
      %p98 = por %p96, %p97
      %p99 = scmp.ne.s32.totalorder %s91, %s94
      %p100 = scmp.eq.s32.totalorder %s15, 0
      %p101 = por %p99, %p100
      %p102 = scmp.ne.s32.totalorder %s91, %s94
      %p103 = scmp.eq.s32.totalorder %s20, 2
      %p104 = por %p102, %p103
      %p105 = scmp.ne.s32.totalorder %s94, %s95
      %p106 = scmp.eq.s32.totalorder %s20, 0
      %p107 = por %p105, %p106
      %p108 = scmp.ne.s32.totalorder %s94, %s95
      %p109 = scmp.eq.s32.totalorder %s21, 2
      %p110 = por %p108, %p109
      %p112 = scmp.ne.s32.totalorder %s95, %s111
      %p113 = scmp.eq.s32.totalorder %s21, 0
      %p114 = por %p112, %p113
      %p115 = scmp.le.s32.totalorder 1, %s15
      %p116 = scmp.lt.s32.totalorder %s15, 4
      %p117 = pnand %p115, %p116
      %p118 = pneg %p117
      // Predicated region
      $region9: #{tpu_custom_call.1} parent=5 // pred_check
        _
      $region10: #{tpu_custom_call.1} parent=5 // pred_check_branch
        %120 = sbr.rel (%p117) target = $region12
      $region11: #{tpu_custom_call.1} parent=5 // pred_region
        %s121 = ssub.s32 %s15, 1
        // Predicated region
        $region13: #{tpu_custom_call.1} parent=11 // pred_check
          %p122 = pneg %p53
        $region14: #{tpu_custom_call.1} parent=11 // pred_check_branch
          %124 = sbr.rel (%p122) target = $region16
        $region15: #{tpu_custom_call.1} parent=11 // pred_region
          %s125 = smul.u32 32, %s25
          %127 = vsyncadd [#allocation3], 0
          %s128 = smul.addr %s125, 4
          %s129 = scalar_lea.hbm %s0, %s128
          %s130 = sshll.u32 %s129, 4
          %s131 = int_to_ptr.hbm [resolvable:$true] %s130
          %s132 = sshll.u32 [#allocation2], 4
          %s133 = int_to_ptr.vmem [resolvable:$true] %s132
          %138 = dma.hbm_to_vmem [thread:$0]  %s131, 2048, %s133, [#allocation3], 64, 64, 4
        $region16: #{tpu_custom_call.1} parent=11 // pred_fallthru
          _
      $region12: #{tpu_custom_call.1} parent=5 // pred_fallthru
        _
      %p139 = scmp.lt.s32.totalorder %s15, 3
      // Predicated region
      $region17: #{tpu_custom_call.1} parent=5 // pred_check
        %p140 = pneg %p139
      $region18: #{tpu_custom_call.1} parent=5 // pred_check_branch
        %142 = sbr.rel (%p140) target = $region20
      $region19: #{tpu_custom_call.1} parent=5 // pred_region
        // Predicated region
        $region21: #{tpu_custom_call.1} parent=19 // pred_check
          %p143 = pneg %p73
        $region22: #{tpu_custom_call.1} parent=19 // pred_check_branch
          %145 = sbr.rel (%p143) target = $region24
        $region23: #{tpu_custom_call.1} parent=19 // pred_region
          %s146 = sand.u32 %s63, 1
          %s147 = scalar_lea.sflag [#allocation6], %s146
          %s148 = sand.u32 %s63, 1
          %s149 = smul.addr %s148, 192
          %s150 = scalar_lea.vmem [#allocation5], %s149
          %152 = vsyncadd %s147, 0
          %s153 = smul.addr %s22, 48
          %s154 = smul.addr %s153, 4
          %s155 = scalar_lea.hbm %s1, %s154
          %s156 = sshll.u32 %s155, 4
          %s157 = int_to_ptr.hbm [resolvable:$true] %s156
          %s158 = sshll.u32 %s150, 4
          %s159 = int_to_ptr.vmem [resolvable:$true] %s158
          %164 = dma.hbm_to_vmem [thread:$0]  %s157, 3072, %s159, %s147, 192, 192, 12
        $region24: #{tpu_custom_call.1} parent=19 // pred_fallthru
          _
      $region20: #{tpu_custom_call.1} parent=5 // pred_fallthru
        _
      %p165 = scmp.le.s32.totalorder 1, %s15
      %p166 = scmp.lt.s32.totalorder %s15, 4
      %p167 = pnand %p165, %p166
      %p168 = pneg %p167
      // Predicated region
      $region25: #{tpu_custom_call.1} parent=5 // pred_check
        _
      $region26: #{tpu_custom_call.1} parent=5 // pred_check_branch
        %170 = sbr.rel (%p167) target = $region28
      $region27: #{tpu_custom_call.1} parent=5 // pred_region
        %s171 = ssub.s32 %s15, 1
        // Predicated region
        $region29: #{tpu_custom_call.1} parent=27 // pred_check
          %p172 = pneg %p53
        $region30: #{tpu_custom_call.1} parent=27 // pred_check_branch
          %174 = sbr.rel (%p172) target = $region32
        $region31: #{tpu_custom_call.1} parent=27 // pred_region
          %176 = dma.done [#allocation3], 2048
        $region32: #{tpu_custom_call.1} parent=27 // pred_fallthru
          _
        %s177 = sand.u32 %s66, 1
        %s178 = scalar_lea.sflag [#allocation6], %s177
        %s179 = sand.u32 %s66, 1
        %s180 = smul.addr %s179, 192
        %s181 = scalar_lea.vmem [#allocation5], %s180
        // Predicated region
        $region33: #{tpu_custom_call.1} parent=27 // pred_check
          %p182 = pneg %p79
        $region34: #{tpu_custom_call.1} parent=27 // pred_check_branch
          %184 = sbr.rel (%p182) target = $region36
        $region35: #{tpu_custom_call.1} parent=27 // pred_region
          %186 = dma.done %s178, 3072
        $region36: #{tpu_custom_call.1} parent=27 // pred_fallthru
          _
        %p187 = pneg %p53
        %p188 = pneg %p50
        %s189 = sand.u32 %s66, 1
        %s190 = scalar_lea.sflag [#allocation6], %s189
        %s191 = sand.u32 %s66, 1
        %s192 = smul.addr %s191, 192
        %s193 = scalar_lea.vmem [#allocation5], %s192
        %p194 = pneg %p79
        %p195 = pneg %p76
        %p196 = pneg %p107
        %p197 = pneg %p104
        %s198 = sand.u32 %s94, 1
        %s199 = scalar_lea.sflag [#allocation4], %s198
        %s200 = sand.u32 %s94, 1
        %s201 = smul.addr %s200, 128
        %s202 = scalar_lea.vmem [#allocation7], %s201
        %s203 = smul.u32 32, %s25
        %s204 = smul.u32 32, %s25
        %v205 = vld [vmem:[#allocation2] sm:$0xf]
        %v206 = vld [vmem:[#allocation2 + $0x4] sm:$0xf]
        %v207 = vld [vmem:[#allocation2 + $0x8] sm:$0xf]
        %v208 = vld [vmem:[#allocation2 + $0xc] sm:$0xf]
        %v209 = vld [vmem:[#allocation2 + $0x10] sm:$0xf]
        %v210 = vld [vmem:[#allocation2 + $0x14] sm:$0xf]
        %v211 = vld [vmem:[#allocation2 + $0x18] sm:$0xf]
        %v212 = vld [vmem:[#allocation2 + $0x1c] sm:$0xf]
        %v213 = vld [vmem:[#allocation2 + $0x20] sm:$0xf]
        %v214 = vld [vmem:[#allocation2 + $0x24] sm:$0xf]
        %v215 = vld [vmem:[#allocation2 + $0x28] sm:$0xf]
        %v216 = vld [vmem:[#allocation2 + $0x2c] sm:$0xf]
        %v217 = vld [vmem:[#allocation2 + $0x30] sm:$0xf]
        %v218 = vld [vmem:[#allocation2 + $0x34] sm:$0xf]
        %v219 = vld [vmem:[#allocation2 + $0x38] sm:$0xf]
        %v220 = vld [vmem:[#allocation2 + $0x3c] sm:$0xf]
        %v221 = vld [vmem:[#allocation2 + $0x40] sm:$0xf]
        %v222 = vld [vmem:[#allocation2 + $0x44] sm:$0xf]
        %v223 = vld [vmem:[#allocation2 + $0x48] sm:$0xf]
        %v224 = vld [vmem:[#allocation2 + $0x4c] sm:$0xf]
        %v225 = vld [vmem:[#allocation2 + $0x50] sm:$0xf]
        %v226 = vld [vmem:[#allocation2 + $0x54] sm:$0xf]
        %v227 = vld [vmem:[#allocation2 + $0x58] sm:$0xf]
        %v228 = vld [vmem:[#allocation2 + $0x5c] sm:$0xf]
        %v229 = vld [vmem:[#allocation2 + $0x60] sm:$0xf]
        %v230 = vld [vmem:[#allocation2 + $0x64] sm:$0xf]
        %v231 = vld [vmem:[#allocation2 + $0x68] sm:$0xf]
        %v232 = vld [vmem:[#allocation2 + $0x6c] sm:$0xf]
        %v233 = vld [vmem:[#allocation2 + $0x70] sm:$0xf]
        %v234 = vld [vmem:[#allocation2 + $0x74] sm:$0xf]
        %v235 = vld [vmem:[#allocation2 + $0x78] sm:$0xf]
        %v236 = vld [vmem:[#allocation2 + $0x7c] sm:$0xf]
        %v237 = vld [vmem:[%s181] sm:$0xff]
        %v238 = vld [vmem:[%s181 + $0x8] sm:$0xf]
        %v239 = vld [vmem:[%s181 + $0xc] sm:$0xff]
        %v240 = vld [vmem:[%s181 + $0x14] sm:$0xf]
        %v241 = vld [vmem:[%s181 + $0x18] sm:$0xff]
        %v242 = vld [vmem:[%s181 + $0x20] sm:$0xf]
        %v243 = vld [vmem:[%s181 + $0x24] sm:$0xff]
        %v244 = vld [vmem:[%s181 + $0x2c] sm:$0xf]
        %v245 = vld [vmem:[%s181 + $0x30] sm:$0xff]
        %v246 = vld [vmem:[%s181 + $0x38] sm:$0xf]
        %v247 = vld [vmem:[%s181 + $0x3c] sm:$0xff]
        %v248 = vld [vmem:[%s181 + $0x44] sm:$0xf]
        %v249 = vld [vmem:[%s181 + $0x48] sm:$0xff]
        %v250 = vld [vmem:[%s181 + $0x50] sm:$0xf]
        %v251 = vld [vmem:[%s181 + $0x54] sm:$0xff]
        %v252 = vld [vmem:[%s181 + $0x5c] sm:$0xf]
        %v253 = vld [vmem:[%s181 + $0x60] sm:$0xff]
        %v254 = vld [vmem:[%s181 + $0x68] sm:$0xf]
        %v255 = vld [vmem:[%s181 + $0x6c] sm:$0xff]
        %v256 = vld [vmem:[%s181 + $0x74] sm:$0xf]
        %v257 = vld [vmem:[%s181 + $0x78] sm:$0xff]
        %v258 = vld [vmem:[%s181 + $0x80] sm:$0xf]
        %v259 = vld [vmem:[%s181 + $0x84] sm:$0xff]
        %v260 = vld [vmem:[%s181 + $0x8c] sm:$0xf]
        %v261 = vld [vmem:[%s181 + $0x90] sm:$0xff]
        %v262 = vld [vmem:[%s181 + $0x98] sm:$0xf]
        %v263 = vld [vmem:[%s181 + $0x9c] sm:$0xff]
        %v264 = vld [vmem:[%s181 + $0xa4] sm:$0xf]
        %v265 = vld [vmem:[%s181 + $0xa8] sm:$0xff]
        %v266 = vld [vmem:[%s181 + $0xb0] sm:$0xf]
        %v267 = vld [vmem:[%s181 + $0xb4] sm:$0xff]
        %v268 = vld [vmem:[%s181 + $0xbc] sm:$0xf]
        %v301 = vunpack.c.l.b16 %v205
        %v302 = vunpack.c.l.b16 %v206
        %v303 = vunpack.c.l.b16 %v207
        %v304 = vunpack.c.l.b16 %v208
        %v305 = vunpack.c.l.b16 %v209
        %v306 = vunpack.c.l.b16 %v210
        %v307 = vunpack.c.l.b16 %v211
        %v308 = vunpack.c.l.b16 %v212
        %v309 = vunpack.c.l.b16 %v213
        %v310 = vunpack.c.l.b16 %v214
        %v311 = vunpack.c.l.b16 %v215
        %v312 = vunpack.c.l.b16 %v216
        %v313 = vunpack.c.l.b16 %v217
        %v314 = vunpack.c.l.b16 %v218
        %v315 = vunpack.c.l.b16 %v219
        %v316 = vunpack.c.l.b16 %v220
        %v317 = vunpack.c.l.b16 %v221
        %v318 = vunpack.c.l.b16 %v222
        %v319 = vunpack.c.l.b16 %v223
        %v320 = vunpack.c.l.b16 %v224
        %v321 = vunpack.c.l.b16 %v225
        %v322 = vunpack.c.l.b16 %v226
        %v323 = vunpack.c.l.b16 %v227
        %v324 = vunpack.c.l.b16 %v228
        %v325 = vunpack.c.l.b16 %v229
        %v326 = vunpack.c.l.b16 %v230
        %v327 = vunpack.c.l.b16 %v231
        %v328 = vunpack.c.l.b16 %v232
        %v329 = vunpack.c.l.b16 %v233
        %v330 = vunpack.c.l.b16 %v234
        %v331 = vunpack.c.l.b16 %v235
        %v332 = vunpack.c.l.b16 %v236
        %v333 = vpack.c.b16 %v302, %v301
        %v334 = vpack.c.b16 %v304, %v303
        %v335 = vpack.c.b16 %v306, %v305
        %v336 = vpack.c.b16 %v308, %v307
        %v337 = vpack.c.b16 %v310, %v309
        %v338 = vpack.c.b16 %v312, %v311
        %v339 = vpack.c.b16 %v314, %v313
        %v340 = vpack.c.b16 %v316, %v315
        %v341 = vpack.c.b16 %v318, %v317
        %v342 = vpack.c.b16 %v320, %v319
        %v343 = vpack.c.b16 %v322, %v321
        %v344 = vpack.c.b16 %v324, %v323
        %v345 = vpack.c.b16 %v326, %v325
        %v346 = vpack.c.b16 %v328, %v327
        %v347 = vpack.c.b16 %v330, %v329
        %v348 = vpack.c.b16 %v332, %v331
        %v397 = vunpack.c.l.b16 %v237
        %v398 = vunpack.c.h.b16 %v237
        %v399 = vunpack.c.l.b16 %v238
        %v400 = vunpack.c.l.b16 %v239
        %v401 = vunpack.c.h.b16 %v239
        %v402 = vunpack.c.l.b16 %v240
        %v403 = vunpack.c.l.b16 %v241
        %v404 = vunpack.c.h.b16 %v241
        %v405 = vunpack.c.l.b16 %v242
        %v406 = vunpack.c.l.b16 %v243
        %v407 = vunpack.c.h.b16 %v243
        %v408 = vunpack.c.l.b16 %v244
        %v409 = vunpack.c.l.b16 %v245
        %v410 = vunpack.c.h.b16 %v245
        %v411 = vunpack.c.l.b16 %v246
        %v412 = vunpack.c.l.b16 %v247
        %v413 = vunpack.c.h.b16 %v247
        %v414 = vunpack.c.l.b16 %v248
        %v415 = vunpack.c.l.b16 %v249
        %v416 = vunpack.c.h.b16 %v249
        %v417 = vunpack.c.l.b16 %v250
        %v418 = vunpack.c.l.b16 %v251
        %v419 = vunpack.c.h.b16 %v251
        %v420 = vunpack.c.l.b16 %v252
        %v421 = vunpack.c.l.b16 %v253
        %v422 = vunpack.c.h.b16 %v253
        %v423 = vunpack.c.l.b16 %v254
        %v424 = vunpack.c.l.b16 %v255
        %v425 = vunpack.c.h.b16 %v255
        %v426 = vunpack.c.l.b16 %v256
        %v427 = vunpack.c.l.b16 %v257
        %v428 = vunpack.c.h.b16 %v257
        %v429 = vunpack.c.l.b16 %v258
        %v430 = vunpack.c.l.b16 %v259
        %v431 = vunpack.c.h.b16 %v259
        %v432 = vunpack.c.l.b16 %v260
        %v433 = vunpack.c.l.b16 %v261
        %v434 = vunpack.c.h.b16 %v261
        %v435 = vunpack.c.l.b16 %v262
        %v436 = vunpack.c.l.b16 %v263
        %v437 = vunpack.c.h.b16 %v263
        %v438 = vunpack.c.l.b16 %v264
        %v439 = vunpack.c.l.b16 %v265
        %v440 = vunpack.c.h.b16 %v265
        %v441 = vunpack.c.l.b16 %v266
        %v442 = vunpack.c.l.b16 %v267
        %v443 = vunpack.c.h.b16 %v267
        %v444 = vunpack.c.l.b16 %v268
        %v445 = vpack.c.b16 %v400, %v397
        %v446 = vpack.c.b16 %v401, %v398
        %v447 = vpack.c.b16 %v402, %v399
        %v448 = vpack.c.b16 %v406, %v403
        %v449 = vpack.c.b16 %v407, %v404
        %v450 = vpack.c.b16 %v408, %v405
        %v451 = vpack.c.b16 %v412, %v409
        %v452 = vpack.c.b16 %v413, %v410
        %v453 = vpack.c.b16 %v414, %v411
        %v454 = vpack.c.b16 %v418, %v415
        %v455 = vpack.c.b16 %v419, %v416
        %v456 = vpack.c.b16 %v420, %v417
        %v457 = vpack.c.b16 %v424, %v421
        %v458 = vpack.c.b16 %v425, %v422
        %v459 = vpack.c.b16 %v426, %v423
        %v460 = vpack.c.b16 %v430, %v427
        %v461 = vpack.c.b16 %v431, %v428
        %v462 = vpack.c.b16 %v432, %v429
        %v463 = vpack.c.b16 %v436, %v433
        %v464 = vpack.c.b16 %v437, %v434
        %v465 = vpack.c.b16 %v438, %v435
        %v466 = vpack.c.b16 %v442, %v439
        %v467 = vpack.c.b16 %v443, %v440
        %v468 = vpack.c.b16 %v444, %v441
        %493 = vmatpush.bf16.msra.mxu0 %v466
        %494 = vmatpush.bf16.msra.mxu0 %v463
        %495 = vmatpush.bf16.msra.mxu0 %v460
        %496 = vmatpush.bf16.msra.mxu0 %v457
        %497 = vmatpush.bf16.msra.mxu0 %v454
        %498 = vmatpush.bf16.msra.mxu0 %v451
        %499 = vmatpush.bf16.msra.mxu0 %v448
        %500 = vmatpush.bf16.msra.mxu0 %v445
        %501 = vmatmul.bf16.gmra.mxu0 %v333
        %v502 = vpop.f32.mrf.mxu0
        %v503 = vadd.f32 0.0, %v502
        %v504 = vpop.f32.mrf.mxu0
        %v505 = vadd.f32 0.0, %v504
        %506 = vmatmul.bf16.gmra.mxu0 %v334
        %v507 = vpop.f32.mrf.mxu0
        %v508 = vadd.f32 0.0, %v507
        %v509 = vpop.f32.mrf.mxu0
        %v510 = vadd.f32 0.0, %v509
        %511 = vmatmul.bf16.gmra.mxu0 %v335
        %v512 = vpop.f32.mrf.mxu0
        %v513 = vadd.f32 0.0, %v512
        %v514 = vpop.f32.mrf.mxu0
        %v515 = vadd.f32 0.0, %v514
        %516 = vmatmul.bf16.gmra.mxu0 %v336
        %v517 = vpop.f32.mrf.mxu0
        %v518 = vadd.f32 0.0, %v517
        %v519 = vpop.f32.mrf.mxu0
        %v520 = vadd.f32 0.0, %v519
        %521 = vmatmul.bf16.gmra.mxu0 %v337
        %v522 = vpop.f32.mrf.mxu0
        %v523 = vadd.f32 0.0, %v522
        %v524 = vpop.f32.mrf.mxu0
        %v525 = vadd.f32 0.0, %v524
        %526 = vmatmul.bf16.gmra.mxu0 %v338
        %v527 = vpop.f32.mrf.mxu0
        %v528 = vadd.f32 0.0, %v527
        %v529 = vpop.f32.mrf.mxu0
        %v530 = vadd.f32 0.0, %v529
        %531 = vmatmul.bf16.gmra.mxu0 %v339
        %v532 = vpop.f32.mrf.mxu0
        %v533 = vadd.f32 0.0, %v532
        %v534 = vpop.f32.mrf.mxu0
        %v535 = vadd.f32 0.0, %v534
        %536 = vmatmul.bf16.gmra.mxu0 %v340
        %v537 = vpop.f32.mrf.mxu0
        %v538 = vadd.f32 0.0, %v537
        %v539 = vpop.f32.mrf.mxu0
        %v540 = vadd.f32 0.0, %v539
        %541 = vmatmul.bf16.gmra.mxu0 %v341
        %v542 = vpop.f32.mrf.mxu0
        %v543 = vadd.f32 0.0, %v542
        %v544 = vpop.f32.mrf.mxu0
        %v545 = vadd.f32 0.0, %v544
        %546 = vmatmul.bf16.gmra.mxu0 %v342
        %v547 = vpop.f32.mrf.mxu0
        %v548 = vadd.f32 0.0, %v547
        %v549 = vpop.f32.mrf.mxu0
        %v550 = vadd.f32 0.0, %v549
        %551 = vmatmul.bf16.gmra.mxu0 %v343
        %v552 = vpop.f32.mrf.mxu0
        %v553 = vadd.f32 0.0, %v552
        %v554 = vpop.f32.mrf.mxu0
        %v555 = vadd.f32 0.0, %v554
        %556 = vmatmul.bf16.gmra.mxu0 %v344
        %v557 = vpop.f32.mrf.mxu0
        %v558 = vadd.f32 0.0, %v557
        %v559 = vpop.f32.mrf.mxu0
        %v560 = vadd.f32 0.0, %v559
        %561 = vmatmul.bf16.gmra.mxu0 %v345
        %v562 = vpop.f32.mrf.mxu0
        %v563 = vadd.f32 0.0, %v562
        %v564 = vpop.f32.mrf.mxu0
        %v565 = vadd.f32 0.0, %v564
        %566 = vmatmul.bf16.gmra.mxu0 %v346
        %v567 = vpop.f32.mrf.mxu0
        %v568 = vadd.f32 0.0, %v567
        %v569 = vpop.f32.mrf.mxu0
        %v570 = vadd.f32 0.0, %v569
        %571 = vmatmul.bf16.gmra.mxu0 %v347
        %v572 = vpop.f32.mrf.mxu0
        %v573 = vadd.f32 0.0, %v572
        %v574 = vpop.f32.mrf.mxu0
        %v575 = vadd.f32 0.0, %v574
        %576 = vmatmul.bf16.gmra.mxu0 %v348
        %v577 = vpop.f32.mrf.mxu0
        %v578 = vadd.f32 0.0, %v577
        %v579 = vpop.f32.mrf.mxu0
        %v580 = vadd.f32 0.0, %v579
        %581 = vdwg.mxu0
        %582 = vmatpush.bf16.msra.mxu0 %v467
        %583 = vmatpush.bf16.msra.mxu0 %v464
        %584 = vmatpush.bf16.msra.mxu0 %v461
        %585 = vmatpush.bf16.msra.mxu0 %v458
        %586 = vmatpush.bf16.msra.mxu0 %v455
        %587 = vmatpush.bf16.msra.mxu0 %v452
        %588 = vmatpush.bf16.msra.mxu0 %v449
        %589 = vmatpush.bf16.msra.mxu0 %v446
        %590 = vmatmul.bf16.gmra.mxu0 %v333
        %v591 = vpop.f32.mrf.mxu0
        %v592 = vadd.f32 0.0, %v591
        %v593 = vpop.f32.mrf.mxu0
        %v594 = vadd.f32 0.0, %v593
        %595 = vmatmul.bf16.gmra.mxu0 %v334
        %v596 = vpop.f32.mrf.mxu0
        %v597 = vadd.f32 0.0, %v596
        %v598 = vpop.f32.mrf.mxu0
        %v599 = vadd.f32 0.0, %v598
        %600 = vmatmul.bf16.gmra.mxu0 %v335
        %v601 = vpop.f32.mrf.mxu0
        %v602 = vadd.f32 0.0, %v601
        %v603 = vpop.f32.mrf.mxu0
        %v604 = vadd.f32 0.0, %v603
        %605 = vmatmul.bf16.gmra.mxu0 %v336
        %v606 = vpop.f32.mrf.mxu0
        %v607 = vadd.f32 0.0, %v606
        %v608 = vpop.f32.mrf.mxu0
        %v609 = vadd.f32 0.0, %v608
        %610 = vmatmul.bf16.gmra.mxu0 %v337
        %v611 = vpop.f32.mrf.mxu0
        %v612 = vadd.f32 0.0, %v611
        %v613 = vpop.f32.mrf.mxu0
        %v614 = vadd.f32 0.0, %v613
        %615 = vmatmul.bf16.gmra.mxu0 %v338
        %v616 = vpop.f32.mrf.mxu0
        %v617 = vadd.f32 0.0, %v616
        %v618 = vpop.f32.mrf.mxu0
        %v619 = vadd.f32 0.0, %v618
        %620 = vmatmul.bf16.gmra.mxu0 %v339
        %v621 = vpop.f32.mrf.mxu0
        %v622 = vadd.f32 0.0, %v621
        %v623 = vpop.f32.mrf.mxu0
        %v624 = vadd.f32 0.0, %v623
        %625 = vmatmul.bf16.gmra.mxu0 %v340
        %v626 = vpop.f32.mrf.mxu0
        %v627 = vadd.f32 0.0, %v626
        %v628 = vpop.f32.mrf.mxu0
        %v629 = vadd.f32 0.0, %v628
        %630 = vmatmul.bf16.gmra.mxu0 %v341
        %v631 = vpop.f32.mrf.mxu0
        %v632 = vadd.f32 0.0, %v631
        %v633 = vpop.f32.mrf.mxu0
        %v634 = vadd.f32 0.0, %v633
        %635 = vmatmul.bf16.gmra.mxu0 %v342
        %v636 = vpop.f32.mrf.mxu0
        %v637 = vadd.f32 0.0, %v636
        %v638 = vpop.f32.mrf.mxu0
        %v639 = vadd.f32 0.0, %v638
        %640 = vmatmul.bf16.gmra.mxu0 %v343
        %v641 = vpop.f32.mrf.mxu0
        %v642 = vadd.f32 0.0, %v641
        %v643 = vpop.f32.mrf.mxu0
        %v644 = vadd.f32 0.0, %v643
        %645 = vmatmul.bf16.gmra.mxu0 %v344
        %v646 = vpop.f32.mrf.mxu0
        %v647 = vadd.f32 0.0, %v646
        %v648 = vpop.f32.mrf.mxu0
        %v649 = vadd.f32 0.0, %v648
        %650 = vmatmul.bf16.gmra.mxu0 %v345
        %v651 = vpop.f32.mrf.mxu0
        %v652 = vadd.f32 0.0, %v651
        %v653 = vpop.f32.mrf.mxu0
        %v654 = vadd.f32 0.0, %v653
        %655 = vmatmul.bf16.gmra.mxu0 %v346
        %v656 = vpop.f32.mrf.mxu0
        %v657 = vadd.f32 0.0, %v656
        %v658 = vpop.f32.mrf.mxu0
        %v659 = vadd.f32 0.0, %v658
        %660 = vmatmul.bf16.gmra.mxu0 %v347
        %v661 = vpop.f32.mrf.mxu0
        %v662 = vadd.f32 0.0, %v661
        %v663 = vpop.f32.mrf.mxu0
        %v664 = vadd.f32 0.0, %v663
        %665 = vmatmul.bf16.gmra.mxu0 %v348
        %v666 = vpop.f32.mrf.mxu0
        %v667 = vadd.f32 0.0, %v666
        %v668 = vpop.f32.mrf.mxu0
        %v669 = vadd.f32 0.0, %v668
        %670 = vdwg.mxu0
        %671 = vmatpush.bf16.msra.mxu0 %v468
        %672 = vmatpush.bf16.msra.mxu0 %v465
        %673 = vmatpush.bf16.msra.mxu0 %v462
        %674 = vmatpush.bf16.msra.mxu0 %v459
        %675 = vmatpush.bf16.msra.mxu0 %v456
        %676 = vmatpush.bf16.msra.mxu0 %v453
        %677 = vmatpush.bf16.msra.mxu0 %v450
        %678 = vmatpush.bf16.msra.mxu0 %v447
        %679 = vmatmul.bf16.gmra.mxu0 %v333
        %v680 = vpop.f32.mrf.mxu0
        %v681 = vadd.f32 0.0, %v680
        %v682 = vpop.f32.mrf.mxu0
        %v683 = vadd.f32 0.0, %v682
        %684 = vmatmul.bf16.gmra.mxu0 %v334
        %v685 = vpop.f32.mrf.mxu0
        %v686 = vadd.f32 0.0, %v685
        %v687 = vpop.f32.mrf.mxu0
        %v688 = vadd.f32 0.0, %v687
        %689 = vmatmul.bf16.gmra.mxu0 %v335
        %v690 = vpop.f32.mrf.mxu0
        %v691 = vadd.f32 0.0, %v690
        %v692 = vpop.f32.mrf.mxu0
        %v693 = vadd.f32 0.0, %v692
        %694 = vmatmul.bf16.gmra.mxu0 %v336
        %v695 = vpop.f32.mrf.mxu0
        %v696 = vadd.f32 0.0, %v695
        %v697 = vpop.f32.mrf.mxu0
        %v698 = vadd.f32 0.0, %v697
        %699 = vmatmul.bf16.gmra.mxu0 %v337
        %v700 = vpop.f32.mrf.mxu0
        %v701 = vadd.f32 0.0, %v700
        %v702 = vpop.f32.mrf.mxu0
        %v703 = vadd.f32 0.0, %v702
        %704 = vmatmul.bf16.gmra.mxu0 %v338
        %v705 = vpop.f32.mrf.mxu0
        %v706 = vadd.f32 0.0, %v705
        %v707 = vpop.f32.mrf.mxu0
        %v708 = vadd.f32 0.0, %v707
        %709 = vmatmul.bf16.gmra.mxu0 %v339
        %v710 = vpop.f32.mrf.mxu0
        %v711 = vadd.f32 0.0, %v710
        %v712 = vpop.f32.mrf.mxu0
        %v713 = vadd.f32 0.0, %v712
        %714 = vmatmul.bf16.gmra.mxu0 %v340
        %v715 = vpop.f32.mrf.mxu0
        %v716 = vadd.f32 0.0, %v715
        %v717 = vpop.f32.mrf.mxu0
        %v718 = vadd.f32 0.0, %v717
        %719 = vmatmul.bf16.gmra.mxu0 %v341
        %v720 = vpop.f32.mrf.mxu0
        %v721 = vadd.f32 0.0, %v720
        %v722 = vpop.f32.mrf.mxu0
        %v723 = vadd.f32 0.0, %v722
        %724 = vmatmul.bf16.gmra.mxu0 %v342
        %v725 = vpop.f32.mrf.mxu0
        %v726 = vadd.f32 0.0, %v725
        %v727 = vpop.f32.mrf.mxu0
        %v728 = vadd.f32 0.0, %v727
        %729 = vmatmul.bf16.gmra.mxu0 %v343
        %v730 = vpop.f32.mrf.mxu0
        %v731 = vadd.f32 0.0, %v730
        %v732 = vpop.f32.mrf.mxu0
        %v733 = vadd.f32 0.0, %v732
        %734 = vmatmul.bf16.gmra.mxu0 %v344
        %v735 = vpop.f32.mrf.mxu0
        %v736 = vadd.f32 0.0, %v735
        %v737 = vpop.f32.mrf.mxu0
        %v738 = vadd.f32 0.0, %v737
        %739 = vmatmul.bf16.gmra.mxu0 %v345
        %v740 = vpop.f32.mrf.mxu0
        %v741 = vadd.f32 0.0, %v740
        %v742 = vpop.f32.mrf.mxu0
        %v743 = vadd.f32 0.0, %v742
        %744 = vmatmul.bf16.gmra.mxu0 %v346
        %v745 = vpop.f32.mrf.mxu0
        %v746 = vadd.f32 0.0, %v745
        %v747 = vpop.f32.mrf.mxu0
        %v748 = vadd.f32 0.0, %v747
        %749 = vmatmul.bf16.gmra.mxu0 %v347
        %v750 = vpop.f32.mrf.mxu0
        %v751 = vadd.f32 0.0, %v750
        %v752 = vpop.f32.mrf.mxu0
        %v753 = vadd.f32 0.0, %v752
        %754 = vmatmul.bf16.gmra.mxu0 %v348
        %v755 = vpop.f32.mrf.mxu0
        %v756 = vadd.f32 0.0, %v755
        %v757 = vpop.f32.mrf.mxu0
        %v758 = vadd.f32 0.0, %v757
        %759 = vdwg.mxu0
        %v760 = vmul.f32 %v592, %v503
        %v761 = vmul.f32 %v594, %v505
        %v762 = vmul.f32 %v597, %v508
        %v763 = vmul.f32 %v599, %v510
        %v764 = vmul.f32 %v602, %v513
        %v765 = vmul.f32 %v604, %v515
        %v766 = vmul.f32 %v607, %v518
        %v767 = vmul.f32 %v609, %v520
        %v768 = vmul.f32 %v612, %v523
        %v769 = vmul.f32 %v614, %v525
        %v770 = vmul.f32 %v617, %v528
        %v771 = vmul.f32 %v619, %v530
        %v772 = vmul.f32 %v622, %v533
        %v773 = vmul.f32 %v624, %v535
        %v774 = vmul.f32 %v627, %v538
        %v775 = vmul.f32 %v629, %v540
        %v776 = vmul.f32 %v632, %v543
        %v777 = vmul.f32 %v634, %v545
        %v778 = vmul.f32 %v637, %v548
        %v779 = vmul.f32 %v639, %v550
        %v780 = vmul.f32 %v642, %v553
        %v781 = vmul.f32 %v644, %v555
        %v782 = vmul.f32 %v647, %v558
        %v783 = vmul.f32 %v649, %v560
        %v784 = vmul.f32 %v652, %v563
        %v785 = vmul.f32 %v654, %v565
        %v786 = vmul.f32 %v657, %v568
        %v787 = vmul.f32 %v659, %v570
        %v788 = vmul.f32 %v662, %v573
        %v789 = vmul.f32 %v664, %v575
        %v790 = vmul.f32 %v667, %v578
        %v791 = vmul.f32 %v669, %v580
        %v792 = vadd.f32 %v760, %v681
        %v793 = vadd.f32 %v761, %v683
        %v794 = vadd.f32 %v762, %v686
        %v795 = vadd.f32 %v763, %v688
        %v796 = vadd.f32 %v764, %v691
        %v797 = vadd.f32 %v765, %v693
        %v798 = vadd.f32 %v766, %v696
        %v799 = vadd.f32 %v767, %v698
        %v800 = vadd.f32 %v768, %v701
        %v801 = vadd.f32 %v769, %v703
        %v802 = vadd.f32 %v770, %v706
        %v803 = vadd.f32 %v771, %v708
        %v804 = vadd.f32 %v772, %v711
        %v805 = vadd.f32 %v773, %v713
        %v806 = vadd.f32 %v774, %v716
        %v807 = vadd.f32 %v775, %v718
        %v808 = vadd.f32 %v776, %v721
        %v809 = vadd.f32 %v777, %v723
        %v810 = vadd.f32 %v778, %v726
        %v811 = vadd.f32 %v779, %v728
        %v812 = vadd.f32 %v780, %v731
        %v813 = vadd.f32 %v781, %v733
        %v814 = vadd.f32 %v782, %v736
        %v815 = vadd.f32 %v783, %v738
        %v816 = vadd.f32 %v784, %v741
        %v817 = vadd.f32 %v785, %v743
        %v818 = vadd.f32 %v786, %v746
        %v819 = vadd.f32 %v787, %v748
        %v820 = vadd.f32 %v788, %v751
        %v821 = vadd.f32 %v789, %v753
        %v822 = vadd.f32 %v790, %v756
        %v823 = vadd.f32 %v791, %v758
        %v824 = vmax.f32 %v792, 0.0
        %v825 = vmax.f32 %v793, 0.0
        %v826 = vmax.f32 %v794, 0.0
        %v827 = vmax.f32 %v795, 0.0
        %v828 = vmax.f32 %v796, 0.0
        %v829 = vmax.f32 %v797, 0.0
        %v830 = vmax.f32 %v798, 0.0
        %v831 = vmax.f32 %v799, 0.0
        %v832 = vmax.f32 %v800, 0.0
        %v833 = vmax.f32 %v801, 0.0
        %v834 = vmax.f32 %v802, 0.0
        %v835 = vmax.f32 %v803, 0.0
        %v836 = vmax.f32 %v804, 0.0
        %v837 = vmax.f32 %v805, 0.0
        %v838 = vmax.f32 %v806, 0.0
        %v839 = vmax.f32 %v807, 0.0
        %v840 = vmax.f32 %v808, 0.0
        %v841 = vmax.f32 %v809, 0.0
        %v842 = vmax.f32 %v810, 0.0
        %v843 = vmax.f32 %v811, 0.0
        %v844 = vmax.f32 %v812, 0.0
        %v845 = vmax.f32 %v813, 0.0
        %v846 = vmax.f32 %v814, 0.0
        %v847 = vmax.f32 %v815, 0.0
        %v848 = vmax.f32 %v816, 0.0
        %v849 = vmax.f32 %v817, 0.0
        %v850 = vmax.f32 %v818, 0.0
        %v851 = vmax.f32 %v819, 0.0
        %v852 = vmax.f32 %v820, 0.0
        %v853 = vmax.f32 %v821, 0.0
        %v854 = vmax.f32 %v822, 0.0
        %v855 = vmax.f32 %v823, 0.0
        %v856 = vpack.c.bf16 %v824, %v824
        %v857 = vpack.c.bf16 %v825, %v825
        %v858 = vpack.c.bf16 %v826, %v826
        %v859 = vpack.c.bf16 %v827, %v827
        %v860 = vpack.c.bf16 %v828, %v828
        %v861 = vpack.c.bf16 %v829, %v829
        %v862 = vpack.c.bf16 %v830, %v830
        %v863 = vpack.c.bf16 %v831, %v831
        %v864 = vpack.c.bf16 %v832, %v832
        %v865 = vpack.c.bf16 %v833, %v833
        %v866 = vpack.c.bf16 %v834, %v834
        %v867 = vpack.c.bf16 %v835, %v835
        %v868 = vpack.c.bf16 %v836, %v836
        %v869 = vpack.c.bf16 %v837, %v837
        %v870 = vpack.c.bf16 %v838, %v838
        %v871 = vpack.c.bf16 %v839, %v839
        %v872 = vpack.c.bf16 %v840, %v840
        %v873 = vpack.c.bf16 %v841, %v841
        %v874 = vpack.c.bf16 %v842, %v842
        %v875 = vpack.c.bf16 %v843, %v843
        %v876 = vpack.c.bf16 %v844, %v844
        %v877 = vpack.c.bf16 %v845, %v845
        %v878 = vpack.c.bf16 %v846, %v846
        %v879 = vpack.c.bf16 %v847, %v847
        %v880 = vpack.c.bf16 %v848, %v848
        %v881 = vpack.c.bf16 %v849, %v849
        %v882 = vpack.c.bf16 %v850, %v850
        %v883 = vpack.c.bf16 %v851, %v851
        %v884 = vpack.c.bf16 %v852, %v852
        %v885 = vpack.c.bf16 %v853, %v853
        %v886 = vpack.c.bf16 %v854, %v854
        %v887 = vpack.c.bf16 %v855, %v855
        %888 = vst [vmem:[%s202] sm:$0xf] %v856
        %889 = vst [vmem:[%s202 + $0x4] sm:$0xf] %v857
        %890 = vst [vmem:[%s202 + $0x8] sm:$0xf] %v858
        %891 = vst [vmem:[%s202 + $0xc] sm:$0xf] %v859
        %892 = vst [vmem:[%s202 + $0x10] sm:$0xf] %v860
        %893 = vst [vmem:[%s202 + $0x14] sm:$0xf] %v861
        %894 = vst [vmem:[%s202 + $0x18] sm:$0xf] %v862
        %895 = vst [vmem:[%s202 + $0x1c] sm:$0xf] %v863
        %896 = vst [vmem:[%s202 + $0x20] sm:$0xf] %v864
        %897 = vst [vmem:[%s202 + $0x24] sm:$0xf] %v865
        %898 = vst [vmem:[%s202 + $0x28] sm:$0xf] %v866
        %899 = vst [vmem:[%s202 + $0x2c] sm:$0xf] %v867
        %900 = vst [vmem:[%s202 + $0x30] sm:$0xf] %v868
        %901 = vst [vmem:[%s202 + $0x34] sm:$0xf] %v869
        %902 = vst [vmem:[%s202 + $0x38] sm:$0xf] %v870
        %903 = vst [vmem:[%s202 + $0x3c] sm:$0xf] %v871
        %904 = vst [vmem:[%s202 + $0x40] sm:$0xf] %v872
        %905 = vst [vmem:[%s202 + $0x44] sm:$0xf] %v873
        %906 = vst [vmem:[%s202 + $0x48] sm:$0xf] %v874
        %907 = vst [vmem:[%s202 + $0x4c] sm:$0xf] %v875
        %908 = vst [vmem:[%s202 + $0x50] sm:$0xf] %v876
        %909 = vst [vmem:[%s202 + $0x54] sm:$0xf] %v877
        %910 = vst [vmem:[%s202 + $0x58] sm:$0xf] %v878
        %911 = vst [vmem:[%s202 + $0x5c] sm:$0xf] %v879
        %912 = vst [vmem:[%s202 + $0x60] sm:$0xf] %v880
        %913 = vst [vmem:[%s202 + $0x64] sm:$0xf] %v881
        %914 = vst [vmem:[%s202 + $0x68] sm:$0xf] %v882
        %915 = vst [vmem:[%s202 + $0x6c] sm:$0xf] %v883
        %916 = vst [vmem:[%s202 + $0x70] sm:$0xf] %v884
        %917 = vst [vmem:[%s202 + $0x74] sm:$0xf] %v885
        %918 = vst [vmem:[%s202 + $0x78] sm:$0xf] %v886
        %919 = vst [vmem:[%s202 + $0x7c] sm:$0xf] %v887
        %s920 = sand.u32 %s94, 1
        %s921 = scalar_lea.sflag [#allocation4], %s920
        %s922 = sand.u32 %s94, 1
        %s923 = smul.addr %s922, 128
        %s924 = scalar_lea.vmem [#allocation7], %s923
        // Predicated region
        $region37: #{tpu_custom_call.1} parent=27 // pred_check
          %p925 = pneg %p104
        $region38: #{tpu_custom_call.1} parent=27 // pred_check_branch
          %927 = sbr.rel (%p925) target = $region40
        $region39: #{tpu_custom_call.1} parent=27 // pred_region
          %s928 = smul.u32 32, %s25
          %930 = vsyncadd %s921, 0
          %s931 = smul.addr %s24, 32
          %s932 = sadd.s32 %s928, %s931
          %s933 = smul.addr %s932, 4
          %s934 = scalar_lea.hbm %s2, %s933
          %s935 = sshll.u32 %s924, 4
          %s936 = int_to_ptr.vmem [resolvable:$true] %s935
          %s937 = sshll.u32 %s934, 4
          %s938 = int_to_ptr.hbm [resolvable:$true] %s937
          %943 = dma.vmem_to_hbm [thread:$0]  %s936, 2048, %s938, %s921, 64, 64, 4
        $region40: #{tpu_custom_call.1} parent=27 // pred_fallthru
          _
      $region28: #{tpu_custom_call.1} parent=5 // pred_fallthru
        _
      %p944 = scmp.le.s32.totalorder 2, %s15
      // Predicated region
      $region41: #{tpu_custom_call.1} parent=5 // pred_check
        %p945 = pneg %p944
      $region42: #{tpu_custom_call.1} parent=5 // pred_check_branch
        %947 = sbr.rel (%p945) target = $region44
      $region43: #{tpu_custom_call.1} parent=5 // pred_region
        %s948 = ssub.s32 %s15, 2
        // Predicated region
        $region45: #{tpu_custom_call.1} parent=43 // pred_check
          %p949 = pneg %p110
        $region46: #{tpu_custom_call.1} parent=43 // pred_check_branch
          %951 = sbr.rel (%p949) target = $region48
        $region47: #{tpu_custom_call.1} parent=43 // pred_region
          %s952 = sand.u32 %s95, 1
          %s953 = scalar_lea.sflag [#allocation4], %s952
          %s954 = sand.u32 %s95, 1
          %s955 = smul.addr %s954, 128
          %s956 = scalar_lea.vmem [#allocation7], %s955
          %958 = dma.done %s953, 2048
        $region48: #{tpu_custom_call.1} parent=43 // pred_fallthru
          _
      $region44: #{tpu_custom_call.1} parent=5 // pred_fallthru
        _
    $region6: #{tpu_custom_call.1} parent=1 // loop_footer
      %s19 = sadd.s32 1, %s15
    $region7: #{tpu_custom_call.1} parent=1 // loop_footer_branch
      %14 = sbr.rel target = $region3
    $region8: #{tpu_custom_call.1} parent=1 // loop_exit
      _
    %959 = vsyncpa [#allocation3], 1
    %s960 = scalar_lea.sflag [#allocation3], 1
    %961 = vsyncpa %s960, 1
    %962 = vsyncpa [#allocation6], 1
    %s963 = scalar_lea.sflag [#allocation6], 1
    %964 = vsyncpa %s963, 1
    %965 = vsyncpa [#allocation4], 1
    %s966 = scalar_lea.sflag [#allocation4], 1
    %967 = vsyncpa %s966, 1

</llo_original>
